<compile_context>
chip_gen: v5e
topology: v5e:2x2
jax: 0.10.0
libtpu: 0.0.40
codegen_flags: <defaults>
</compile_context>

<pallas_src>
import functools

import jax
import jax.numpy as jnp
from jax.experimental import pallas as pl
from jax.experimental.pallas import tpu as pltpu


def _softplus(x):
    # numerically-stable softplus: max(x,0) + log1p(exp(-|x|))
    return jnp.maximum(x, 0.0) + jnp.log1p(jnp.exp(-jnp.abs(x)))


def _round_up(x, m):
    return (x + m - 1) // m * m


def _vmem_capacity_bytes():
    """Generation-aware physical VMEM size; conservative (v7x) fallback."""
    try:
        info = pltpu.get_tpu_info()
        for name in ("vmem_capacity_bytes", "vmem_size_bytes", "vmem_bytes"):
            v = getattr(info, name, None)
            if v:
                return int(v)
    except Exception:
        pass
    return 64 * 2**20  # v7x per-TensorCore VMEM (safe lower bound)


def center_loss_kernel(labels_ref, feats_ref, centers_ref, dist_ref, *,
                       num_classes: int, batch_size: int, tile_b: int,
                       use_softplus: bool):
    i = pl.program_id(0)
    start = pl.multiple_of(i * tile_b, tile_b)

    # (TB, 1) int32 labels sliced from the resident table; clamp matches the
    # torch.clamp guard in the module.
    labels = jnp.clip(labels_ref[pl.ds(start, tile_b), :], 0, num_classes - 1)

    # One-hot gather of class centers via MXU matmul (small-C path).
    # One-hot is built in the centers' dtype (0/1 exact), f32 accumulation on MXU.
    class_ids = jax.lax.broadcasted_iota(jnp.int32, (tile_b, num_classes), 1)
    onehot = (class_ids == labels).astype(centers_ref.dtype)           # (TB, C)
    centers_batch = jnp.dot(onehot, centers_ref[...],
                            preferred_element_type=jnp.float32)        # (TB, D) f32

    diff = feats_ref[...].astype(jnp.float32) - centers_batch
    sq_dist = jnp.sum(diff * diff, axis=1, keepdims=True)              # (TB, 1)

    dist = _softplus(sq_dist) if use_softplus else sq_dist

    # Mask padded rows of the last (partial) tile (keeps garbage deterministic;
    # the final mean divides by the true B outside).
    row = start + jax.lax.broadcasted_iota(jnp.int32, (tile_b, 1), 0)
    dist_ref[...] = jnp.where(row < batch_size, dist, 0.0)


def _choose_tile_b(B, D, C, feat_bytes, cent_bytes, budget):
    """Largest batch tile fitting a generation-aware VMEM budget."""
    centers_bytes = 2 * C * D * cent_bytes          # resident centers (default 2 bufs)
    tb_cap = 2048 if budget >= 80 * 2**20 else 512  # big tiles on 128-MiB-VMEM chips
    tb = min(tb_cap, _round_up(B, 8))
    while tb > 8:
        tile_bytes = (2 * tb * D * feat_bytes       # double-buffered feature tile
                      + 2 * tb * 4                  # double-buffered output tile
                      + 2 * (_round_up(B, 8) + tb) * 4   # resident labels (2 bufs)
                      + 4 * tb * (C + 2 * D))       # f32 temporaries
        if centers_bytes + tile_bytes <= budget:
            break
        tb = _round_up(tb // 2, 8)
    return max(_round_up(tb, 8), 8)


def center_loss(features, labels, centers, *, weight=1.0, use_softplus=True,
                tile_b=None):
    """features: (B, D), labels: (B,) int, centers: (C, D) -> scalar loss (f32)."""
    B, D = features.shape
    C, Dc = centers.shape
    assert D == Dc, "feature_dim mismatch between features and centers"

    # PyTorch: 2-D one-hot / probability labels -> argmax (cheap glue outside kernel).
    if labels.ndim > 1 and labels.shape[1] > 1:
        labels = jnp.argmax(labels, axis=1)
    labels = labels.astype(jnp.int32).reshape(B)

    feat_bytes = jnp.dtype(features.dtype).itemsize
    cent_bytes = jnp.dtype(centers.dtype).itemsize

    vmem_cap = _vmem_capacity_bytes()
    budget = int(0.75 * vmem_cap)        # ~48 MiB on v7x, ~96 MiB on v5e/v6e

    if tile_b is None:
        tile_b = _choose_tile_b(B, D, C, feat_bytes, cent_bytes, budget)
    tile_b = _round_up(max(8, min(int(tile_b), _round_up(B, 8))), 8)
    grid_b = pl.cdiv(B, tile_b)
    padded_b = grid_b * tile_b

    # Resident label table, zero-padded so all dynamic slices are in bounds.
    labels2d = jnp.zeros((padded_b, 1), jnp.int32).at[:B, 0].set(labels)

    # VMEM accounting: streamed feature/output tiles (2 bufs) + resident labels and
    # centers + f32 temporaries; leave headroom below physical capacity.
    vmem_needed = (2 * tile_b * D * feat_bytes
                   + 2 * tile_b * 4
                   + 2 * padded_b * 4
                   + 2 * C * D * cent_bytes
                   + 4 * tile_b * (C + 2 * D))
    vmem_limit = int(min(max(2 * vmem_needed, 16 * 2**20), int(0.85 * vmem_cap)))

    cost = pl.CostEstimate(
        flops=int(2 * B * C * D + 4 * B * D),
        transcendentals=int(2 * B) if use_softplus else 0,
        bytes_accessed=int(B * D * feat_bytes + C * D * cent_bytes + 8 * B),
    )

    kernel = functools.partial(center_loss_kernel,
                               num_classes=C, batch_size=B, tile_b=tile_b,
                               use_softplus=use_softplus)

    dists = pl.pallas_call(
        kernel,
        out_shape=jax.ShapeDtypeStruct((B, 1), jnp.float32),
        grid=(grid_b,),
        in_specs=[
            pl.BlockSpec((padded_b, 1), lambda i: (0, 0)),   # labels, resident
            pl.BlockSpec((tile_b, D), lambda i: (i, 0)),     # features, streamed
            pl.BlockSpec((C, D), lambda i: (0, 0)),          # centers, resident
        ],
        out_specs=pl.BlockSpec((tile_b, 1), lambda i: (i, 0)),  # per-row distances
        compiler_params=pltpu.CompilerParams(
            dimension_semantics=("parallel",),               # no carried state
            vmem_limit_bytes=vmem_limit),
        cost_estimate=cost,
    )(labels2d, features, centers)

    # Tiny epilogue reduction outside the kernel (keeps the grid fully parallel).
    return (weight * jnp.sum(dists) / B).astype(jnp.float32)


def _reference(features, labels, centers, weight=1.0, use_softplus=True):
    labels = jnp.clip(labels, 0, centers.shape[0] - 1)
    cb = centers[labels]
    diff = features.astype(jnp.float32) - cb.astype(jnp.float32)
    d = jnp.sum(diff * diff, axis=1)
    if use_softplus:
        d = jax.nn.softplus(d)
    return weight * jnp.mean(d)


if __name__ == "__main__":
    num_classes = 10
    feature_dim = 32
    batch = 20          # not a multiple of the tile -> exercises remainder masking
    weight = 1.0

    key = jax.random.PRNGKey(0)
    k1, k2, k3 = jax.random.split(key, 3)

    # deterministic "randn" init for centers, as in the module's __init__
    centers = jax.random.normal(k1, (num_classes, feature_dim), dtype=jnp.float32)
    features = jax.random.normal(k2, (batch, feature_dim), dtype=jnp.float32)
    labels = jax.random.randint(k3, (batch,), 0, num_classes, dtype=jnp.int32)

    ref = _reference(features, labels, centers, weight=weight, use_softplus=True)

    # Multi-step grid (tile_b=8 -> 3 grid steps, last tile partially masked).
    loss_tiled = center_loss(features, labels, centers, weight=weight,
                             use_softplus=True, tile_b=8)
    loss_tiled = jax.block_until_ready(loss_tiled)
    assert jnp.allclose(loss_tiled, ref, rtol=1e-5, atol=1e-5), (loss_tiled, ref)

    # Default (auto, generation-aware) tile size path -> single grid step here.
    loss_auto = center_loss(features, labels, centers, weight=weight,
                            use_softplus=True)
    loss_auto = jax.block_until_ready(loss_auto)
    assert jnp.allclose(loss_auto, ref, rtol=1e-5, atol=1e-5), (loss_auto, ref)

    print("KERNEL_OK")
</pallas_src>

<mosaic_0001>
module attributes {stable_mosaic.version = 11 : i64} {
  func.func @center_loss_kernel(%arg0: i32, %arg1: memref<24x1xi32, #tpu.memory_space<vmem>>, %arg2: memref<8x32xf32, #tpu.memory_space<vmem>>, %arg3: memref<10x32xf32, #tpu.memory_space<vmem>>, %arg4: memref<8x1xf32, #tpu.memory_space<vmem>>) attributes {dimension_semantics = [#tpu.dimension_semantics<parallel>], iteration_bounds = array<i64: 3>, scalar_prefetch = 0 : i64, scratch_operands = 0 : i64, tpu.core_type = #tpu.core_type<tc>, window_params = [{pipeline_mode = #tpu.pipeline_mode<synchronous>, transform_indices = @transform_0, window_bounds = array<i64: 24, 1>}, {transform_indices = @transform_1, window_bounds = array<i64: 8, 32>}, {pipeline_mode = #tpu.pipeline_mode<synchronous>, transform_indices = @transform_2, window_bounds = array<i64: 10, 32>}, {transform_indices = @transform_3, window_bounds = array<i64: 8, 1>}]} {
    %c8_i32 = arith.constant 8 : i32
    %0 = arith.muli %arg0, %c8_i32 : i32
    %1 = tpu.assume_multiple %0, 8 : i32
    %2 = arith.index_cast %1 : i32 to index
    %c0 = arith.constant 0 : index
    %3 = vector.load %arg1[%2, %c0] : memref<24x1xi32, #tpu.memory_space<vmem>>, vector<8x1xi32>
    %c0_i32 = arith.constant 0 : i32
    %c9_i32 = arith.constant 9 : i32
    %4 = vector.broadcast %c0_i32 : i32 to vector<8x1xi32>
    %5 = arith.maxsi %4, %3 : vector<8x1xi32>
    %6 = vector.broadcast %c9_i32 : i32 to vector<8x1xi32>
    %7 = arith.minsi %6, %5 : vector<8x1xi32>
    %8 = tpu.iota {dimensions = array<i32: 1>} : vector<8x10xi32>
    %9 = vector.broadcast %7 : vector<8x1xi32> to vector<8x10xi32>
    %10 = arith.cmpi eq, %8, %9 : vector<8x10xi32>
    %11 = arith.extui %10 : vector<8x10xi1> to vector<8x10xi32>
    %12 = arith.sitofp %11 : vector<8x10xi32> to vector<8x10xf32>
    %c0_0 = arith.constant 0 : index
    %c0_1 = arith.constant 0 : index
    %13 = vector.load %arg3[%c0_0, %c0_1] : memref<10x32xf32, #tpu.memory_space<vmem>>, vector<10x32xf32>
    %cst = arith.constant dense<0.000000e+00> : vector<8x32xf32>
    %14 = tpu.matmul %12, %13, %cst {dimension_numbers = #tpu.dot_dimension_numbers<[1], [0], [0], [1], [0, 0, 1, 1], [], []>} : vector<8x10xf32>, vector<10x32xf32>, vector<8x32xf32> -> vector<8x32xf32>
    %c0_2 = arith.constant 0 : index
    %c0_3 = arith.constant 0 : index
    %15 = vector.load %arg2[%c0_2, %c0_3] : memref<8x32xf32, #tpu.memory_space<vmem>>, vector<8x32xf32>
    %16 = arith.subf %15, %14 : vector<8x32xf32>
    %17 = arith.mulf %16, %16 : vector<8x32xf32>
    %cst_4 = arith.constant dense<0.000000e+00> : vector<8xf32>
    %18 = vector.multi_reduction <add>, %17, %cst_4 [1] : vector<8x32xf32> to vector<8xf32>
    %19 = vector.shape_cast %18 : vector<8xf32> to vector<8x1xf32>
    %cst_5 = arith.constant 0.000000e+00 : f32
    %20 = vector.broadcast %cst_5 : f32 to vector<8x1xf32>
    %21 = arith.maximumf %19, %20 : vector<8x1xf32>
    %22 = math.absf %19 : vector<8x1xf32>
    %cst_6 = arith.constant 0.000000e+00 : f32
    %23 = vector.broadcast %cst_6 : f32 to vector<8x1xf32>
    %24 = arith.subf %23, %22 : vector<8x1xf32>
    %25 = math.exp %24 : vector<8x1xf32>
    %26 = math.log1p %25 : vector<8x1xf32>
    %27 = arith.addf %21, %26 : vector<8x1xf32>
    %28 = tpu.iota {dimensions = array<i32: 0>} : vector<8x1xi32>
    %29 = vector.broadcast %1 : i32 to vector<8x1xi32>
    %30 = arith.addi %29, %28 : vector<8x1xi32>
    %c20_i32 = arith.constant 20 : i32
    %31 = vector.broadcast %c20_i32 : i32 to vector<8x1xi32>
    %32 = arith.cmpi slt, %30, %31 : vector<8x1xi32>
    %cst_7 = arith.constant 0.000000e+00 : f32
    %33 = vector.broadcast %cst_7 : f32 to vector<8x1xf32>
    %34 = arith.select %32, %27, %33 : vector<8x1xi1>, vector<8x1xf32>
    %c0_8 = arith.constant 0 : index
    %c0_9 = arith.constant 0 : index
    %35 = vector.load %arg4[%c0_8, %c0_9] : memref<8x1xf32, #tpu.memory_space<vmem>>, vector<8x1xf32>
    tpu.vector_store %arg4[%c0_8, %c0_9], %34 {strides = array<i32>} : memref<8x1xf32, #tpu.memory_space<vmem>>, vector<8x1xf32>,
    return
  }
  func.func @transform_0(%arg0: i32) -> (i32, i32) {
    %c0_i32 = arith.constant 0 : i32
    %c0_i32_0 = arith.constant 0 : i32
    %c0_i32_1 = arith.constant 0 : i32
    return %c0_i32, %c0_i32_0 : i32, i32
  }
  func.func @transform_1(%arg0: i32) -> (i32, i32) {
    %c0_i32 = arith.constant 0 : i32
    %c0_i32_0 = arith.constant 0 : i32
    return %arg0, %c0_i32 : i32, i32
  }
  func.func @transform_2(%arg0: i32) -> (i32, i32) {
    %c0_i32 = arith.constant 0 : i32
    %c0_i32_0 = arith.constant 0 : i32
    %c0_i32_1 = arith.constant 0 : i32
    return %c0_i32, %c0_i32_0 : i32, i32
  }
  func.func @transform_3(%arg0: i32) -> (i32, i32) {
    %c0_i32 = arith.constant 0 : i32
    %c0_i32_0 = arith.constant 0 : i32
    return %arg0, %c0_i32 : i32, i32
  }
}

</mosaic_0001>

<llo_original>
// kernel: tpu_custom_call.1
$region0: #{tpu_custom_call.1}
  #allocation0 [shape = 'u32[]', space=smem, size = 0x4, offset = 0x4, fixed_abs, tag = 'smem constant byte address 0x4 - core index']
  #allocation1 [shape = 'u32[72,128]{1,0:T(1,128)}', space=vmem, size = 0x9000, scoped, tag = 'internal scratch']
  %s0 = inlined_call_operand.vmem [shape: s32[24,1], index: 0, kind: input, shape index: {}]
  %s1 = inlined_call_operand.vmem [shape: f32[20,32], index: 1, kind: input, shape index: {}]
  %s2 = inlined_call_operand.hbm [shape: f32[10,32], index: 2, kind: input, shape index: {}]
  %s3 = inlined_call_operand.vmem [shape: f32[20,1], index: 3, kind: output, shape index: {}]
  %s4 = sld [smem:[#allocation0]]
  $region49: #{tpu_custom_call.1} parent=0
    _
  %s6 = ssub.s32 1, %s4
  %s7 = scalar_select 0, %s6, %s4
  $region1: #{tpu_custom_call.1} parent=0
    #allocation2 [shape = 'u8[8192]{0}', space=vmem, size = 0x2000, scoped, tag = 'input window, operand 2, single buffered']
    #allocation3 [shape = 's32[2]{0}', space=sflag, size = 0x8, scoped, tag = 'scoped memory for tpu_custom_call.1']
    %8 = vsyncpa [#allocation3], 0
    loop: start=0, step=1, limit=5
    $region2: #{tpu_custom_call.1} parent=1 // loop_pre_header
      _
    $region3: #{tpu_custom_call.1} parent=1 // loop_header
      %s10 = sphi 0, %s14
      %p11 = scmp.ge.s32.totalorder %s10, 5
      %s18 = sphi 0, %s18
      %s20 = sphi 0, %s18
      %s21 = sphi 0, %s20
      %s35 = sphi 0, %s21
      %s41 = sphi 0, %s43
      %s44 = sphi 0, %s41
      %s45 = sphi 0, %s44
      %s61 = sphi 0, %s45
      %s65 = sphi 0, %s65
      %s67 = sphi 0, %s65
      %s68 = sphi 0, %s67
      %s82 = sphi 0, %s68
      %s88 = sphi 0, %s90
      %s91 = sphi 0, %s88
      %s92 = sphi 0, %s91
      %s108 = sphi 0, %s92
    $region4: #{tpu_custom_call.1} parent=1 // loop_header_branch
      %13 = sbr.rel (%p11) target = $region8
    $region5: #{tpu_custom_call.1} parent=1 // loop_body
      %s15 = ssub.s32 %s10, 1
      %s16 = ssub.s32 %s10, 2
      %s17 = sadd.s32 %s10, 1
      %s19 = sadd.s32 %s18, 1
      %p22 = scmp.eq.s32.totalorder %s10, 2
      %p23 = scmp.ne.s32.totalorder %s18, %s20
      %p24 = scmp.eq.s32.totalorder %s10, 0
      %p25 = por %p23, %p24
      %p26 = scmp.ne.s32.totalorder %s18, %s20
      %p27 = scmp.eq.s32.totalorder %s15, 2
      %p28 = por %p26, %p27
      %p29 = scmp.ne.s32.totalorder %s20, %s21
      %p30 = scmp.eq.s32.totalorder %s15, 0
      %p31 = por %p29, %p30
      %p32 = scmp.ne.s32.totalorder %s20, %s21
      %p33 = scmp.eq.s32.totalorder %s16, 2
      %p34 = por %p32, %p33
      %p36 = scmp.ne.s32.totalorder %s21, %s35
      %p37 = scmp.eq.s32.totalorder %s16, 0
      %p38 = por %p36, %p37
      %s39 = ssub.s32 %s10, %s17
      %p40 = scmp.eq.s32.totalorder %s39, 0
      %s42 = sadd.s32 %s41, 1
      %s43 = scalar_select %p40, %s41, %s42
      %p46 = pneg %p40
      %p47 = scmp.eq.s32.totalorder %s10, 2
      %p48 = por %p46, %p47
      %p49 = scmp.ne.s32.totalorder %s41, %s44
      %p50 = scmp.eq.s32.totalorder %s10, 0
      %p51 = por %p49, %p50
      %p52 = scmp.ne.s32.totalorder %s41, %s44
      %p53 = scmp.eq.s32.totalorder %s15, 2
      %p54 = por %p52, %p53
      %p55 = scmp.ne.s32.totalorder %s44, %s45
      %p56 = scmp.eq.s32.totalorder %s15, 0
      %p57 = por %p55, %p56
      %p58 = scmp.ne.s32.totalorder %s44, %s45
      %p59 = scmp.eq.s32.totalorder %s16, 2
      %p60 = por %p58, %p59
      %p62 = scmp.ne.s32.totalorder %s45, %s61
      %p63 = scmp.eq.s32.totalorder %s16, 0
      %p64 = por %p62, %p63
      %s66 = sadd.s32 %s65, 1
      %p69 = scmp.eq.s32.totalorder %s10, 2
      %p70 = scmp.ne.s32.totalorder %s65, %s67
      %p71 = scmp.eq.s32.totalorder %s10, 0
      %p72 = por %p70, %p71
      %p73 = scmp.ne.s32.totalorder %s65, %s67
      %p74 = scmp.eq.s32.totalorder %s15, 2
      %p75 = por %p73, %p74
      %p76 = scmp.ne.s32.totalorder %s67, %s68
      %p77 = scmp.eq.s32.totalorder %s15, 0
      %p78 = por %p76, %p77
      %p79 = scmp.ne.s32.totalorder %s67, %s68
      %p80 = scmp.eq.s32.totalorder %s16, 2
      %p81 = por %p79, %p80
      %p83 = scmp.ne.s32.totalorder %s68, %s82
      %p84 = scmp.eq.s32.totalorder %s16, 0
      %p85 = por %p83, %p84
      %s86 = ssub.s32 %s10, %s17
      %p87 = scmp.eq.s32.totalorder %s86, 0
      %s89 = sadd.s32 %s88, 1
      %s90 = scalar_select %p87, %s88, %s89
      %p93 = pneg %p87
      %p94 = scmp.eq.s32.totalorder %s10, 2
      %p95 = por %p93, %p94
      %p96 = scmp.ne.s32.totalorder %s88, %s91
      %p97 = scmp.eq.s32.totalorder %s10, 0
      %p98 = por %p96, %p97
      %p99 = scmp.ne.s32.totalorder %s88, %s91
      %p100 = scmp.eq.s32.totalorder %s15, 2
      %p101 = por %p99, %p100
      %p102 = scmp.ne.s32.totalorder %s91, %s92
      %p103 = scmp.eq.s32.totalorder %s15, 0
      %p104 = por %p102, %p103
      %p105 = scmp.ne.s32.totalorder %s91, %s92
      %p106 = scmp.eq.s32.totalorder %s16, 2
      %p107 = por %p105, %p106
      %p109 = scmp.ne.s32.totalorder %s92, %s108
      %p110 = scmp.eq.s32.totalorder %s16, 0
      %p111 = por %p109, %p110
      %p112 = scmp.le.s32.totalorder 1, %s10
      %p113 = scmp.lt.s32.totalorder %s10, 4
      %p114 = pnand %p112, %p113
      %p115 = pneg %p114
      // Predicated region
      $region9: #{tpu_custom_call.1} parent=5 // pred_check
        _
      $region10: #{tpu_custom_call.1} parent=5 // pred_check_branch
        %117 = sbr.rel (%p114) target = $region12
      $region11: #{tpu_custom_call.1} parent=5 // pred_region
        %s118 = ssub.s32 %s10, 1
        // Predicated region
        $region13: #{tpu_custom_call.1} parent=11 // pred_check
          %p119 = pneg %p31
        $region14: #{tpu_custom_call.1} parent=11 // pred_check_branch
          %121 = sbr.rel (%p119) target = $region16
        $region15: #{tpu_custom_call.1} parent=11 // pred_region
          _
        $region16: #{tpu_custom_call.1} parent=11 // pred_fallthru
          _
        // Predicated region
        $region17: #{tpu_custom_call.1} parent=11 // pred_check
          %p122 = pneg %p78
        $region18: #{tpu_custom_call.1} parent=11 // pred_check_branch
          %124 = sbr.rel (%p122) target = $region20
        $region19: #{tpu_custom_call.1} parent=11 // pred_region
          %126 = vsyncadd [#allocation3], 0
          %s127 = sshll.u32 %s2, 4
          %s128 = int_to_ptr.hbm [resolvable:$true] %s127
          %s129 = sshll.u32 [#allocation2], 4
          %s130 = int_to_ptr.vmem [resolvable:$true] %s129
          %135 = dma.hbm_to_vmem [thread:$0]  %s128, 256, %s130, [#allocation3], 128, 128, 8
        $region20: #{tpu_custom_call.1} parent=11 // pred_fallthru
          _
      $region12: #{tpu_custom_call.1} parent=5 // pred_fallthru
        _
      %p136 = scmp.lt.s32.totalorder %s10, 3
      // Predicated region
      $region21: #{tpu_custom_call.1} parent=5 // pred_check
        %p137 = pneg %p136
      $region22: #{tpu_custom_call.1} parent=5 // pred_check_branch
        %139 = sbr.rel (%p137) target = $region24
      $region23: #{tpu_custom_call.1} parent=5 // pred_region
        // Predicated region
        $region25: #{tpu_custom_call.1} parent=23 // pred_check
          %p140 = pneg %p51
        $region26: #{tpu_custom_call.1} parent=23 // pred_check_branch
          %142 = sbr.rel (%p140) target = $region28
        $region27: #{tpu_custom_call.1} parent=23 // pred_region
          %p143 = scmp.lt.s32.totalorder %s10, 2
          %s144 = scalar_select %p143, %s10, 2
          %s145 = smul.addr %s144, 8
          %s146 = scalar_lea.vmem %s1, %s145
        $region28: #{tpu_custom_call.1} parent=23 // pred_fallthru
          _
      $region24: #{tpu_custom_call.1} parent=5 // pred_fallthru
        _
      %p147 = scmp.le.s32.totalorder 1, %s10
      %p148 = scmp.lt.s32.totalorder %s10, 4
      %p149 = pnand %p147, %p148
      %p150 = pneg %p149
      // Predicated region
      $region29: #{tpu_custom_call.1} parent=5 // pred_check
        _
      $region30: #{tpu_custom_call.1} parent=5 // pred_check_branch
        %152 = sbr.rel (%p149) target = $region32
      $region31: #{tpu_custom_call.1} parent=5 // pred_region
        %s153 = ssub.s32 %s10, 1
        // Predicated region
        $region33: #{tpu_custom_call.1} parent=31 // pred_check
          %p154 = pneg %p78
        $region34: #{tpu_custom_call.1} parent=31 // pred_check_branch
          %156 = sbr.rel (%p154) target = $region36
        $region35: #{tpu_custom_call.1} parent=31 // pred_region
          %158 = dma.done [#allocation3], 256
        $region36: #{tpu_custom_call.1} parent=31 // pred_fallthru
          _
        %p159 = pneg %p31
        %p160 = pneg %p28
        %p161 = scmp.lt.s32.totalorder %s15, 2
        %s162 = scalar_select %p161, %s15, 2
        %s163 = smul.addr %s162, 8
        %s164 = scalar_lea.vmem %s1, %s163
        %p165 = pneg %p57
        %p166 = pneg %p54
        %p167 = pneg %p78
        %p168 = pneg %p75
        %p169 = pneg %p104
        %p170 = pneg %p101
        %p171 = scmp.lt.s32.totalorder %s15, 2
        %s172 = scalar_select %p171, %s15, 2
        %s173 = smul.addr %s172, 8
        %s174 = scalar_lea.vmem %s3, %s173
        %p175 = scmp.lt.s32.totalorder %s15, 2
        %s176 = scalar_select %p175, %s15, 2
        %s177 = smul.addr %s176, 8
        %s178 = scalar_lea.vmem %s1, %s177
        %p179 = scmp.lt.s32.totalorder %s15, 2
        %s180 = scalar_select %p179, %s15, 2
        %s181 = smul.addr %s180, 8
        %s182 = scalar_lea.vmem %s3, %s181
        %s183 = smul.u32 %s15, 8
        %s184 = scalar_lea.vmem %s0, %s183
        %v185 = vld [vmem:[%s184] sm:$0xff]
        %vm186 = vcmp.gt.s32.totalorder %v185, 0
        %v187 = vsel %vm186, %v185, 0
        %vm188 = vcmp.lt.s32.totalorder %v187, 9
        %v189 = vsel %vm188, %v187, 9
        %v190 = vlaneseq
        %v191 = vand.u32 %v190, 127
        %192 = vset.pattern.permute.xlu0 0
        %193 = vperm.xlu0 %192, %v189
        %v194 = vpop.permute.xlu0 %193
        %vm195 = vcmp.eq.s32.totalorder %v191, %v194
        %v196 = vsel %vm195, 1, 0
        %v197 = vcvt.s32.f32 %v196
        %v198 = vld [vmem:[#allocation2] sm:$0xff]
        %v199 = vld [vmem:[#allocation2 + $0x8] sm:$0x3]
        %vm200 = vcmask 80896
        %v202 = vsel %vm200, %v197, 0
        %vm204 = vcmask 1041408
        %v206 = vsel %vm204, %v199, 0
        %208 = vmatpush.msra.mxu0 0.0
        %209 = vmatpush.msra.mxu0 0.0
        %210 = vmatpush.msra.mxu0 0.0
        %211 = vmatpush.msra.mxu0 0.0
        %212 = vmatpush.msra.mxu0 0.0
        %213 = vmatpush.msra.mxu0 0.0
        %214 = vmatpush.msra.mxu0 0.0
        %215 = vmatpush.msra.mxu0 0.0
        %216 = vmatpush.msra.mxu0 0.0
        %217 = vmatpush.msra.mxu0 0.0
        %218 = vmatpush.msra.mxu0 0.0
        %219 = vmatpush.msra.mxu0 0.0
        %220 = vmatpush.msra.mxu0 0.0
        %221 = vmatpush.msra.mxu0 0.0
        %222 = vmatpush.msra.mxu0 %v206
        %223 = vmatpush.msra.mxu0 %v198
        %224 = vmatmul.f32.gmra.mxu0 %v202
        %v225 = vpop.f32.mrf.mxu0
        %v226 = vadd.f32 0.0, %v225
        %227 = vdwg.mxu0
        %v228 = vld [vmem:[%s178] sm:$0xff]
        %v229 = vsub.f32 %v228, %v226
        %v230 = vmul.f32 %v229, %v229
        %vm231 = vcmask 261120
        %v232 = vsel %vm231, %v230, 0.0
        %233 = vadd.xlane.f32.xlu0 %v232
        %v234 = vpop.xlane.xlu0 %233
        %v235 = vmax.f32 %v234, 0.0
        %v236 = vand.u32 2147483647, %v234
        %v237 = vsub.f32 0.0, %v236
        %v238 = vmul.f32 %v237, 1.442695
        %v239 = vpow.pop %v238
        %v240 = vadd.f32 %v239, 1.0
        %v241 = vlog2.pop %v240
        %v242 = vmul.f32 %v241, 0.6931472
        %v243 = vmul.f32 -0.5, %v239
        %v244 = vadd.f32 %v243, 1.0
        %v245 = vmul.f32 %v244, %v239
        %v246 = vand.u32 2147483647, %v239
        %vm247 = vcmp.lt.f32.partialorder %v246, 0.0004427343
        %v248 = vsel %vm247, %v245, %v242
        %v249 = vadd.f32 %v235, %v248
        %v250 = vlaneseq
        %v251 = vshrl.u32 %v250, 7
        %v252 = vstv %s183
        %v253 = vadd.s32 %v252, %v251
        %vm254 = vcmp.lt.s32.totalorder %v253, 20
        %v255 = vsel %vm254, %v249, 0.0
        %vm256 = vcmask 7168
        %257 = vst.msk [vmem:[%s182] sm:$0xff] %vm256, %v255
        %p258 = scmp.lt.s32.totalorder %s15, 2
        %s259 = scalar_select %p258, %s15, 2
        %s260 = smul.addr %s259, 8
        %s261 = scalar_lea.vmem %s3, %s260
        // Predicated region
        $region37: #{tpu_custom_call.1} parent=31 // pred_check
          %p262 = pneg %p101
        $region38: #{tpu_custom_call.1} parent=31 // pred_check_branch
          %264 = sbr.rel (%p262) target = $region40
        $region39: #{tpu_custom_call.1} parent=31 // pred_region
          _
        $region40: #{tpu_custom_call.1} parent=31 // pred_fallthru
          _
      $region32: #{tpu_custom_call.1} parent=5 // pred_fallthru
        _
      %p265 = scmp.le.s32.totalorder 2, %s10
      // Predicated region
      $region41: #{tpu_custom_call.1} parent=5 // pred_check
        %p266 = pneg %p265
      $region42: #{tpu_custom_call.1} parent=5 // pred_check_branch
        %268 = sbr.rel (%p266) target = $region44
      $region43: #{tpu_custom_call.1} parent=5 // pred_region
        %s269 = ssub.s32 %s10, 2
        // Predicated region
        $region45: #{tpu_custom_call.1} parent=43 // pred_check
          %p270 = pneg %p107
        $region46: #{tpu_custom_call.1} parent=43 // pred_check_branch
          %272 = sbr.rel (%p270) target = $region48
        $region47: #{tpu_custom_call.1} parent=43 // pred_region
          %p273 = scmp.lt.s32.totalorder %s16, 2
          %s274 = scalar_select %p273, %s16, 2
          %s275 = smul.addr %s274, 8
          %s276 = scalar_lea.vmem %s3, %s275
        $region48: #{tpu_custom_call.1} parent=43 // pred_fallthru
          _
      $region44: #{tpu_custom_call.1} parent=5 // pred_fallthru
        _
    $region6: #{tpu_custom_call.1} parent=1 // loop_footer
      %s14 = sadd.s32 1, %s10
    $region7: #{tpu_custom_call.1} parent=1 // loop_footer_branch
      %9 = sbr.rel target = $region3
    $region8: #{tpu_custom_call.1} parent=1 // loop_exit
      _
    %277 = vsyncpa [#allocation3], 1
    %s278 = scalar_lea.sflag [#allocation3], 1
    %279 = vsyncpa %s278, 1

</llo_original>
